<compile_context>
chip_gen: v7x
topology: tpu7x:2x2x1
jax: 0.10.0
libtpu: 0.0.40
codegen_flags: <defaults>
</compile_context>

<pallas_src>
import jax
import jax.numpy as jnp
from jax.experimental import pallas as pl
from jax.experimental.pallas import tpu as pltpu

OUT_PAD = 128  # lane-dense padded width for the output layer


def actor_kernel(x_ref, w1_ref, b1_ref, w2_ref, b2_ref, w3_ref, b3_ref, o_ref):
    x = x_ref[...]                                    # [TILE_B, in_dim] fp32
    # fc1 + relu  (bf16 MXU inputs, fp32 accumulate, fp32 elementwise)
    h1 = jnp.dot(x.astype(jnp.bfloat16), w1_ref[...],
                 preferred_element_type=jnp.float32)
    h1 = jnp.maximum(h1 + b1_ref[...], 0.0)
    # fc2 + relu
    h2 = jnp.dot(h1.astype(jnp.bfloat16), w2_ref[...],
                 preferred_element_type=jnp.float32)
    h2 = jnp.maximum(h2 + b2_ref[...], 0.0)
    # output layer (padded to 128 lanes) + tanh
    out = jnp.dot(h2.astype(jnp.bfloat16), w3_ref[...],
                  preferred_element_type=jnp.float32)
    o_ref[...] = jnp.tanh(out + b3_ref[...])          # [TILE_B, OUT_PAD] fp32


def actor_forward(state, params, *, tile_b=256):
    """state: [B, input_dim] float32; params: dict from make_actor_params.

    Returns [B, n_actions] float32 actions in (-1, 1).
    """
    w1, b1 = params["w1"], params["b1"]
    w2, b2 = params["w2"], params["b2"]
    w3, b3 = params["w3"], params["b3"]
    n_actions = params["n_actions"]

    B, in_dim = state.shape
    b_pad = tile_b * pl.cdiv(B, tile_b)
    if b_pad != B:
        state = jnp.pad(state, ((0, b_pad - B), (0, 0)))
    grid = (b_pad // tile_b,)

    # Weights/biases: one block covering the whole array, same block index for
    # every grid step -> they stay resident in VMEM while state/output stream.
    def resident(shape):
        return pl.BlockSpec(shape, lambda i: (0, 0))

    out = pl.pallas_call(
        actor_kernel,
        out_shape=jax.ShapeDtypeStruct((b_pad, OUT_PAD), jnp.float32),
        grid=grid,
        in_specs=[
            pl.BlockSpec((tile_b, in_dim), lambda i: (i, 0)),  # state tile
            resident(w1.shape), resident(b1.shape),
            resident(w2.shape), resident(b2.shape),
            resident(w3.shape), resident(b3.shape),
        ],
        out_specs=pl.BlockSpec((tile_b, OUT_PAD), lambda i: (i, 0)),
        compiler_params=pltpu.CompilerParams(
            dimension_semantics=("parallel",)),
    )(state, w1, b1, w2, b2, w3, b3)

    return out[:B, :n_actions]


def init_linear_params(key, in_features, out_features, *, pad_out=None):
    """PyTorch nn.Linear default init: U(-1/sqrt(fan_in), 1/sqrt(fan_in)).

    Weight returned transposed [in_features, out_features] in bf16 (MXU
    inputs); bias [1, out_features] fp32.  If pad_out is given, zero-pad the
    output dimension to pad_out lanes (lane-dense store).
    """
    kw, kb = jax.random.split(key)
    bound = 1.0 / jnp.sqrt(jnp.float32(in_features))
    w = jax.random.uniform(
        kw, (in_features, out_features), jnp.float32, minval=-bound, maxval=bound)
    b = jax.random.uniform(
        kb, (1, out_features), jnp.float32, minval=-bound, maxval=bound)
    if pad_out is not None and pad_out > out_features:
        w = jnp.pad(w, ((0, 0), (0, pad_out - out_features)))
        b = jnp.pad(b, ((0, 0), (0, pad_out - out_features)))
    return w.astype(jnp.bfloat16), b.astype(jnp.float32)


def make_actor_params(key, input_dim, fc1_dims=256, fc2_dims=128, n_actions=2):
    k1, k2, k3 = jax.random.split(key, 3)
    w1, b1 = init_linear_params(k1, input_dim, fc1_dims)
    w2, b2 = init_linear_params(k2, fc1_dims, fc2_dims)
    w3, b3 = init_linear_params(k3, fc2_dims, n_actions, pad_out=OUT_PAD)
    return {"w1": w1, "b1": b1, "w2": w2, "b2": b2, "w3": w3, "b3": b3,
            "n_actions": n_actions}


def actor_reference(state, params):
    """Pure-JAX reference with identical bf16-input / fp32-accum arithmetic."""
    h1 = jnp.maximum(
        jnp.dot(state.astype(jnp.bfloat16), params["w1"],
                preferred_element_type=jnp.float32) + params["b1"], 0.0)
    h2 = jnp.maximum(
        jnp.dot(h1.astype(jnp.bfloat16), params["w2"],
                preferred_element_type=jnp.float32) + params["b2"], 0.0)
    out = jnp.tanh(
        jnp.dot(h2.astype(jnp.bfloat16), params["w3"],
                preferred_element_type=jnp.float32) + params["b3"])
    return out[:, :params["n_actions"]]


if __name__ == "__main__":
    key = jax.random.PRNGKey(0)
    k_params, k_state_big, k_state_small = jax.random.split(key, 3)

    input_dim = 16       # input_dims=(16,)
    fc1_dims = 256
    fc2_dims = 128
    n_actions = 2

    params = make_actor_params(k_params, input_dim, fc1_dims, fc2_dims, n_actions)

    # Case 1: batched evaluation, multi-step grid (512 rows, TILE_B=256 -> grid=(2,)).
    state_big = jax.random.normal(k_state_big, (512, input_dim), jnp.float32)
    act_big = jax.block_until_ready(actor_forward(state_big, params, tile_b=256))
    ref_big = actor_reference(state_big, params)
    assert act_big.shape == (512, n_actions)
    assert jnp.allclose(act_big, ref_big, atol=1e-3, rtol=1e-3)

    # Case 2: tiny batch (exercises the batch-padding path).
    state_small = jax.random.normal(k_state_small, (8, input_dim), jnp.float32)
    act_small = jax.block_until_ready(actor_forward(state_small, params, tile_b=256))
    ref_small = actor_reference(state_small, params)
    assert act_small.shape == (8, n_actions)
    assert jnp.allclose(act_small, ref_small, atol=1e-3, rtol=1e-3)
    assert jnp.all(jnp.abs(act_small) <= 1.0)

    print("KERNEL_OK")
</pallas_src>

<mosaic_0001>
module attributes {stable_mosaic.version = 11 : i64} {
  func.func @actor_kernel(%arg0: i32, %arg1: memref<256x16xf32, #tpu.memory_space<vmem>>, %arg2: memref<16x256xbf16, #tpu.memory_space<vmem>>, %arg3: memref<1x256xf32, #tpu.memory_space<vmem>>, %arg4: memref<256x128xbf16, #tpu.memory_space<vmem>>, %arg5: memref<1x128xf32, #tpu.memory_space<vmem>>, %arg6: memref<128x128xbf16, #tpu.memory_space<vmem>>, %arg7: memref<1x128xf32, #tpu.memory_space<vmem>>, %arg8: memref<256x128xf32, #tpu.memory_space<vmem>>) attributes {dimension_semantics = [#tpu.dimension_semantics<parallel>], iteration_bounds = array<i64: 2>, scalar_prefetch = 0 : i64, scratch_operands = 0 : i64, tpu.core_type = #tpu.core_type<tc>, window_params = [{transform_indices = @transform_0, window_bounds = array<i64: 256, 16>}, {pipeline_mode = #tpu.pipeline_mode<synchronous>, transform_indices = @transform_1, window_bounds = array<i64: 16, 256>}, {pipeline_mode = #tpu.pipeline_mode<synchronous>, transform_indices = @transform_2, window_bounds = array<i64: 1, 256>}, {pipeline_mode = #tpu.pipeline_mode<synchronous>, transform_indices = @transform_3, window_bounds = array<i64: 256, 128>}, {pipeline_mode = #tpu.pipeline_mode<synchronous>, transform_indices = @transform_4, window_bounds = array<i64: 1, 128>}, {pipeline_mode = #tpu.pipeline_mode<synchronous>, transform_indices = @transform_5, window_bounds = array<i64: 128, 128>}, {pipeline_mode = #tpu.pipeline_mode<synchronous>, transform_indices = @transform_6, window_bounds = array<i64: 1, 128>}, {transform_indices = @transform_7, window_bounds = array<i64: 256, 128>}]} {
    %c0 = arith.constant 0 : index
    %c0_0 = arith.constant 0 : index
    %0 = vector.load %arg1[%c0, %c0_0] : memref<256x16xf32, #tpu.memory_space<vmem>>, vector<256x16xf32>
    %1 = arith.truncf %0 : vector<256x16xf32> to vector<256x16xbf16>
    %c0_1 = arith.constant 0 : index
    %c0_2 = arith.constant 0 : index
    %2 = vector.load %arg2[%c0_1, %c0_2] : memref<16x256xbf16, #tpu.memory_space<vmem>>, vector<16x256xbf16>
    %cst = arith.constant dense<0.000000e+00> : vector<256x256xf32>
    %3 = tpu.matmul %1, %2, %cst {dimension_numbers = #tpu.dot_dimension_numbers<[1], [0], [0], [1], [0, 0, 1, 1], [], []>} : vector<256x16xbf16>, vector<16x256xbf16>, vector<256x256xf32> -> vector<256x256xf32>
    %c0_3 = arith.constant 0 : index
    %c0_4 = arith.constant 0 : index
    %4 = vector.load %arg3[%c0_3, %c0_4] : memref<1x256xf32, #tpu.memory_space<vmem>>, vector<1x256xf32>
    %5 = vector.broadcast %4 : vector<1x256xf32> to vector<256x256xf32>
    %6 = arith.addf %3, %5 : vector<256x256xf32>
    %cst_5 = arith.constant 0.000000e+00 : f32
    %7 = vector.broadcast %cst_5 : f32 to vector<256x256xf32>
    %8 = arith.maximumf %6, %7 : vector<256x256xf32>
    %9 = arith.truncf %8 : vector<256x256xf32> to vector<256x256xbf16>
    %c0_6 = arith.constant 0 : index
    %c0_7 = arith.constant 0 : index
    %10 = vector.load %arg4[%c0_6, %c0_7] : memref<256x128xbf16, #tpu.memory_space<vmem>>, vector<256x128xbf16>
    %cst_8 = arith.constant dense<0.000000e+00> : vector<256x128xf32>
    %11 = tpu.matmul %9, %10, %cst_8 {dimension_numbers = #tpu.dot_dimension_numbers<[1], [0], [0], [1], [0, 0, 1, 1], [], []>} : vector<256x256xbf16>, vector<256x128xbf16>, vector<256x128xf32> -> vector<256x128xf32>
    %c0_9 = arith.constant 0 : index
    %c0_10 = arith.constant 0 : index
    %12 = vector.load %arg5[%c0_9, %c0_10] : memref<1x128xf32, #tpu.memory_space<vmem>>, vector<1x128xf32>
    %13 = vector.broadcast %12 : vector<1x128xf32> to vector<256x128xf32>
    %14 = arith.addf %11, %13 : vector<256x128xf32>
    %cst_11 = arith.constant 0.000000e+00 : f32
    %15 = vector.broadcast %cst_11 : f32 to vector<256x128xf32>
    %16 = arith.maximumf %14, %15 : vector<256x128xf32>
    %17 = arith.truncf %16 : vector<256x128xf32> to vector<256x128xbf16>
    %c0_12 = arith.constant 0 : index
    %c0_13 = arith.constant 0 : index
    %18 = vector.load %arg6[%c0_12, %c0_13] : memref<128x128xbf16, #tpu.memory_space<vmem>>, vector<128x128xbf16>
    %cst_14 = arith.constant dense<0.000000e+00> : vector<256x128xf32>
    %19 = tpu.matmul %17, %18, %cst_14 {dimension_numbers = #tpu.dot_dimension_numbers<[1], [0], [0], [1], [0, 0, 1, 1], [], []>} : vector<256x128xbf16>, vector<128x128xbf16>, vector<256x128xf32> -> vector<256x128xf32>
    %c0_15 = arith.constant 0 : index
    %c0_16 = arith.constant 0 : index
    %20 = vector.load %arg7[%c0_15, %c0_16] : memref<1x128xf32, #tpu.memory_space<vmem>>, vector<1x128xf32>
    %21 = vector.broadcast %20 : vector<1x128xf32> to vector<256x128xf32>
    %22 = arith.addf %19, %21 : vector<256x128xf32>
    %23 = math.tanh %22 : vector<256x128xf32>
    %c0_17 = arith.constant 0 : index
    %c0_18 = arith.constant 0 : index
    %24 = vector.load %arg8[%c0_17, %c0_18] : memref<256x128xf32, #tpu.memory_space<vmem>>, vector<256x128xf32>
    tpu.vector_store %arg8[%c0_17, %c0_18], %23 {strides = array<i32>} : memref<256x128xf32, #tpu.memory_space<vmem>>, vector<256x128xf32>,
    return
  }
  func.func @transform_0(%arg0: i32) -> (i32, i32) {
    %c0_i32 = arith.constant 0 : i32
    %c0_i32_0 = arith.constant 0 : i32
    return %arg0, %c0_i32 : i32, i32
  }
  func.func @transform_1(%arg0: i32) -> (i32, i32) {
    %c0_i32 = arith.constant 0 : i32
    %c0_i32_0 = arith.constant 0 : i32
    %c0_i32_1 = arith.constant 0 : i32
    return %c0_i32, %c0_i32_0 : i32, i32
  }
  func.func @transform_2(%arg0: i32) -> (i32, i32) {
    %c0_i32 = arith.constant 0 : i32
    %c0_i32_0 = arith.constant 0 : i32
    %c0_i32_1 = arith.constant 0 : i32
    return %c0_i32, %c0_i32_0 : i32, i32
  }
  func.func @transform_3(%arg0: i32) -> (i32, i32) {
    %c0_i32 = arith.constant 0 : i32
    %c0_i32_0 = arith.constant 0 : i32
    %c0_i32_1 = arith.constant 0 : i32
    return %c0_i32, %c0_i32_0 : i32, i32
  }
  func.func @transform_4(%arg0: i32) -> (i32, i32) {
    %c0_i32 = arith.constant 0 : i32
    %c0_i32_0 = arith.constant 0 : i32
    %c0_i32_1 = arith.constant 0 : i32
    return %c0_i32, %c0_i32_0 : i32, i32
  }
  func.func @transform_5(%arg0: i32) -> (i32, i32) {
    %c0_i32 = arith.constant 0 : i32
    %c0_i32_0 = arith.constant 0 : i32
    %c0_i32_1 = arith.constant 0 : i32
    return %c0_i32, %c0_i32_0 : i32, i32
  }
  func.func @transform_6(%arg0: i32) -> (i32, i32) {
    %c0_i32 = arith.constant 0 : i32
    %c0_i32_0 = arith.constant 0 : i32
    %c0_i32_1 = arith.constant 0 : i32
    return %c0_i32, %c0_i32_0 : i32, i32
  }
  func.func @transform_7(%arg0: i32) -> (i32, i32) {
    %c0_i32 = arith.constant 0 : i32
    %c0_i32_0 = arith.constant 0 : i32
    return %arg0, %c0_i32 : i32, i32
  }
}

</mosaic_0001>

<llo_original>
// kernel: tpu_custom_call.1
$region0: #{tpu_custom_call.1}
  #allocation0 [shape = 'u32[]', space=smem, size = 0x4, offset = 0x4, fixed_abs, tag = 'smem constant byte address 0x4 - core index']
  #allocation1 [shape = 'u32[144,128]{1,0:T(1,128)}', space=vmem, size = 0x12000, scoped, tag = 'internal scratch']
  %s0 = inlined_call_operand.vmem [shape: f32[512,16], index: 0, kind: input, shape index: {}]
  %s1 = inlined_call_operand.vmem [shape: bf16[16,256], index: 1, kind: input, shape index: {}]
  %s2 = inlined_call_operand.vmem [shape: f32[1,256], index: 2, kind: input, shape index: {}]
  %s3 = inlined_call_operand.vmem [shape: bf16[256,128], index: 3, kind: input, shape index: {}]
  %s4 = inlined_call_operand.vmem [shape: f32[1,128], index: 4, kind: input, shape index: {}]
  %s5 = inlined_call_operand.vmem [shape: bf16[128,128], index: 5, kind: input, shape index: {}]
  %s6 = inlined_call_operand.vmem [shape: f32[1,128], index: 6, kind: input, shape index: {}]
  %s7 = inlined_call_operand.hbm [shape: f32[512,128], index: 7, kind: output, shape index: {}]
  %s8 = sld [smem:[#allocation0]]
  $region61: #{tpu_custom_call.1} parent=0
    _
  %s10 = ssub.s32 1, %s8
  %s11 = scalar_select 0, %s10, %s8
  $region1: #{tpu_custom_call.1} parent=0
    #allocation2 [shape = 'u8[262144]{0}', space=vmem, size = 0x40000, scoped, tag = 'output window, operand 0']
    #allocation3 [shape = 's32[2]{0}', space=sflag, size = 0x8, scoped, tag = 'scoped memory for tpu_custom_call.1']
    %12 = vsyncpa [#allocation3], 0
    %s13 = scalar_lea.sflag [#allocation3], 1
    %14 = vsyncpa %s13, 0
    loop: start=0, step=1, limit=4
    $region2: #{tpu_custom_call.1} parent=1 // loop_pre_header
      _
    $region3: #{tpu_custom_call.1} parent=1 // loop_header
      %s16 = sphi 0, %s20
      %p17 = scmp.ge.s32.totalorder %s16, 4
      %s26 = sphi 0, %s28
      %s29 = sphi 0, %s26
      %s30 = sphi 0, %s29
      %s46 = sphi 0, %s30
      %s50 = sphi 0, %s50
      %s52 = sphi 0, %s50
      %s53 = sphi 0, %s52
      %s67 = sphi 0, %s53
      %s71 = sphi 0, %s71
      %s73 = sphi 0, %s71
      %s74 = sphi 0, %s73
      %s88 = sphi 0, %s74
      %s92 = sphi 0, %s92
      %s94 = sphi 0, %s92
      %s95 = sphi 0, %s94
      %s109 = sphi 0, %s95
      %s113 = sphi 0, %s113
      %s115 = sphi 0, %s113
      %s116 = sphi 0, %s115
      %s130 = sphi 0, %s116
      %s134 = sphi 0, %s134
      %s136 = sphi 0, %s134
      %s137 = sphi 0, %s136
      %s151 = sphi 0, %s137
      %s155 = sphi 0, %s155
      %s157 = sphi 0, %s155
      %s158 = sphi 0, %s157
      %s172 = sphi 0, %s158
      %s178 = sphi 0, %s180
      %s181 = sphi 0, %s178
      %s182 = sphi 0, %s181
      %s198 = sphi 0, %s182
    $region4: #{tpu_custom_call.1} parent=1 // loop_header_branch
      %19 = sbr.rel (%p17) target = $region8
    $region5: #{tpu_custom_call.1} parent=1 // loop_body
      %s21 = ssub.s32 %s16, 1
      %s22 = ssub.s32 %s16, 2
      %s23 = sadd.s32 %s16, 1
      %s24 = ssub.s32 %s16, %s23
      %p25 = scmp.eq.s32.totalorder %s24, 0
      %s27 = sadd.s32 %s26, 1
      %s28 = scalar_select %p25, %s26, %s27
      %p31 = pneg %p25
      %p32 = scmp.eq.s32.totalorder %s16, 1
      %p33 = por %p31, %p32
      %p34 = scmp.ne.s32.totalorder %s26, %s29
      %p35 = scmp.eq.s32.totalorder %s16, 0
      %p36 = por %p34, %p35
      %p37 = scmp.ne.s32.totalorder %s26, %s29
      %p38 = scmp.eq.s32.totalorder %s21, 1
      %p39 = por %p37, %p38
      %p40 = scmp.ne.s32.totalorder %s29, %s30
      %p41 = scmp.eq.s32.totalorder %s21, 0
      %p42 = por %p40, %p41
      %p43 = scmp.ne.s32.totalorder %s29, %s30
      %p44 = scmp.eq.s32.totalorder %s22, 1
      %p45 = por %p43, %p44
      %p47 = scmp.ne.s32.totalorder %s30, %s46
      %p48 = scmp.eq.s32.totalorder %s22, 0
      %p49 = por %p47, %p48
      %s51 = sadd.s32 %s50, 1
      %p54 = scmp.eq.s32.totalorder %s16, 1
      %p55 = scmp.ne.s32.totalorder %s50, %s52
      %p56 = scmp.eq.s32.totalorder %s16, 0
      %p57 = por %p55, %p56
      %p58 = scmp.ne.s32.totalorder %s50, %s52
      %p59 = scmp.eq.s32.totalorder %s21, 1
      %p60 = por %p58, %p59
      %p61 = scmp.ne.s32.totalorder %s52, %s53
      %p62 = scmp.eq.s32.totalorder %s21, 0
      %p63 = por %p61, %p62
      %p64 = scmp.ne.s32.totalorder %s52, %s53
      %p65 = scmp.eq.s32.totalorder %s22, 1
      %p66 = por %p64, %p65
      %p68 = scmp.ne.s32.totalorder %s53, %s67
      %p69 = scmp.eq.s32.totalorder %s22, 0
      %p70 = por %p68, %p69
      %s72 = sadd.s32 %s71, 1
      %p75 = scmp.eq.s32.totalorder %s16, 1
      %p76 = scmp.ne.s32.totalorder %s71, %s73
      %p77 = scmp.eq.s32.totalorder %s16, 0
      %p78 = por %p76, %p77
      %p79 = scmp.ne.s32.totalorder %s71, %s73
      %p80 = scmp.eq.s32.totalorder %s21, 1
      %p81 = por %p79, %p80
      %p82 = scmp.ne.s32.totalorder %s73, %s74
      %p83 = scmp.eq.s32.totalorder %s21, 0
      %p84 = por %p82, %p83
      %p85 = scmp.ne.s32.totalorder %s73, %s74
      %p86 = scmp.eq.s32.totalorder %s22, 1
      %p87 = por %p85, %p86
      %p89 = scmp.ne.s32.totalorder %s74, %s88
      %p90 = scmp.eq.s32.totalorder %s22, 0
      %p91 = por %p89, %p90
      %s93 = sadd.s32 %s92, 1
      %p96 = scmp.eq.s32.totalorder %s16, 1
      %p97 = scmp.ne.s32.totalorder %s92, %s94
      %p98 = scmp.eq.s32.totalorder %s16, 0
      %p99 = por %p97, %p98
      %p100 = scmp.ne.s32.totalorder %s92, %s94
      %p101 = scmp.eq.s32.totalorder %s21, 1
      %p102 = por %p100, %p101
      %p103 = scmp.ne.s32.totalorder %s94, %s95
      %p104 = scmp.eq.s32.totalorder %s21, 0
      %p105 = por %p103, %p104
      %p106 = scmp.ne.s32.totalorder %s94, %s95
      %p107 = scmp.eq.s32.totalorder %s22, 1
      %p108 = por %p106, %p107
      %p110 = scmp.ne.s32.totalorder %s95, %s109
      %p111 = scmp.eq.s32.totalorder %s22, 0
      %p112 = por %p110, %p111
      %s114 = sadd.s32 %s113, 1
      %p117 = scmp.eq.s32.totalorder %s16, 1
      %p118 = scmp.ne.s32.totalorder %s113, %s115
      %p119 = scmp.eq.s32.totalorder %s16, 0
      %p120 = por %p118, %p119
      %p121 = scmp.ne.s32.totalorder %s113, %s115
      %p122 = scmp.eq.s32.totalorder %s21, 1
      %p123 = por %p121, %p122
      %p124 = scmp.ne.s32.totalorder %s115, %s116
      %p125 = scmp.eq.s32.totalorder %s21, 0
      %p126 = por %p124, %p125
      %p127 = scmp.ne.s32.totalorder %s115, %s116
      %p128 = scmp.eq.s32.totalorder %s22, 1
      %p129 = por %p127, %p128
      %p131 = scmp.ne.s32.totalorder %s116, %s130
      %p132 = scmp.eq.s32.totalorder %s22, 0
      %p133 = por %p131, %p132
      %s135 = sadd.s32 %s134, 1
      %p138 = scmp.eq.s32.totalorder %s16, 1
      %p139 = scmp.ne.s32.totalorder %s134, %s136
      %p140 = scmp.eq.s32.totalorder %s16, 0
      %p141 = por %p139, %p140
      %p142 = scmp.ne.s32.totalorder %s134, %s136
      %p143 = scmp.eq.s32.totalorder %s21, 1
      %p144 = por %p142, %p143
      %p145 = scmp.ne.s32.totalorder %s136, %s137
      %p146 = scmp.eq.s32.totalorder %s21, 0
      %p147 = por %p145, %p146
      %p148 = scmp.ne.s32.totalorder %s136, %s137
      %p149 = scmp.eq.s32.totalorder %s22, 1
      %p150 = por %p148, %p149
      %p152 = scmp.ne.s32.totalorder %s137, %s151
      %p153 = scmp.eq.s32.totalorder %s22, 0
      %p154 = por %p152, %p153
      %s156 = sadd.s32 %s155, 1
      %p159 = scmp.eq.s32.totalorder %s16, 1
      %p160 = scmp.ne.s32.totalorder %s155, %s157
      %p161 = scmp.eq.s32.totalorder %s16, 0
      %p162 = por %p160, %p161
      %p163 = scmp.ne.s32.totalorder %s155, %s157
      %p164 = scmp.eq.s32.totalorder %s21, 1
      %p165 = por %p163, %p164
      %p166 = scmp.ne.s32.totalorder %s157, %s158
      %p167 = scmp.eq.s32.totalorder %s21, 0
      %p168 = por %p166, %p167
      %p169 = scmp.ne.s32.totalorder %s157, %s158
      %p170 = scmp.eq.s32.totalorder %s22, 1
      %p171 = por %p169, %p170
      %p173 = scmp.ne.s32.totalorder %s158, %s172
      %p174 = scmp.eq.s32.totalorder %s22, 0
      %p175 = por %p173, %p174
      %s176 = ssub.s32 %s16, %s23
      %p177 = scmp.eq.s32.totalorder %s176, 0
      %s179 = sadd.s32 %s178, 1
      %s180 = scalar_select %p177, %s178, %s179
      %p183 = pneg %p177
      %p184 = scmp.eq.s32.totalorder %s16, 1
      %p185 = por %p183, %p184
      %p186 = scmp.ne.s32.totalorder %s178, %s181
      %p187 = scmp.eq.s32.totalorder %s16, 0
      %p188 = por %p186, %p187
      %p189 = scmp.ne.s32.totalorder %s178, %s181
      %p190 = scmp.eq.s32.totalorder %s21, 1
      %p191 = por %p189, %p190
      %p192 = scmp.ne.s32.totalorder %s181, %s182
      %p193 = scmp.eq.s32.totalorder %s21, 0
      %p194 = por %p192, %p193
      %p195 = scmp.ne.s32.totalorder %s181, %s182
      %p196 = scmp.eq.s32.totalorder %s22, 1
      %p197 = por %p195, %p196
      %p199 = scmp.ne.s32.totalorder %s182, %s198
      %p200 = scmp.eq.s32.totalorder %s22, 0
      %p201 = por %p199, %p200
      %p202 = scmp.le.s32.totalorder 1, %s16
      %p203 = scmp.lt.s32.totalorder %s16, 3
      %p204 = pnand %p202, %p203
      %p205 = pneg %p204
      // Predicated region
      $region9: #{tpu_custom_call.1} parent=5 // pred_check
        _
      $region10: #{tpu_custom_call.1} parent=5 // pred_check_branch
        %207 = sbr.rel (%p204) target = $region12
      $region11: #{tpu_custom_call.1} parent=5 // pred_region
        %s208 = ssub.s32 %s16, 1
        // Predicated region
        $region13: #{tpu_custom_call.1} parent=11 // pred_check
          %p209 = pneg %p63
        $region14: #{tpu_custom_call.1} parent=11 // pred_check_branch
          %211 = sbr.rel (%p209) target = $region16
        $region15: #{tpu_custom_call.1} parent=11 // pred_region
          _
        $region16: #{tpu_custom_call.1} parent=11 // pred_fallthru
          _
        // Predicated region
        $region17: #{tpu_custom_call.1} parent=11 // pred_check
          %p212 = pneg %p84
        $region18: #{tpu_custom_call.1} parent=11 // pred_check_branch
          %214 = sbr.rel (%p212) target = $region20
        $region19: #{tpu_custom_call.1} parent=11 // pred_region
          _
        $region20: #{tpu_custom_call.1} parent=11 // pred_fallthru
          _
        // Predicated region
        $region21: #{tpu_custom_call.1} parent=11 // pred_check
          %p215 = pneg %p105
        $region22: #{tpu_custom_call.1} parent=11 // pred_check_branch
          %217 = sbr.rel (%p215) target = $region24
        $region23: #{tpu_custom_call.1} parent=11 // pred_region
          _
        $region24: #{tpu_custom_call.1} parent=11 // pred_fallthru
          _
        // Predicated region
        $region25: #{tpu_custom_call.1} parent=11 // pred_check
          %p218 = pneg %p126
        $region26: #{tpu_custom_call.1} parent=11 // pred_check_branch
          %220 = sbr.rel (%p218) target = $region28
        $region27: #{tpu_custom_call.1} parent=11 // pred_region
          _
        $region28: #{tpu_custom_call.1} parent=11 // pred_fallthru
          _
        // Predicated region
        $region29: #{tpu_custom_call.1} parent=11 // pred_check
          %p221 = pneg %p147
        $region30: #{tpu_custom_call.1} parent=11 // pred_check_branch
          %223 = sbr.rel (%p221) target = $region32
        $region31: #{tpu_custom_call.1} parent=11 // pred_region
          _
        $region32: #{tpu_custom_call.1} parent=11 // pred_fallthru
          _
        // Predicated region
        $region33: #{tpu_custom_call.1} parent=11 // pred_check
          %p224 = pneg %p168
        $region34: #{tpu_custom_call.1} parent=11 // pred_check_branch
          %226 = sbr.rel (%p224) target = $region36
        $region35: #{tpu_custom_call.1} parent=11 // pred_region
          _
        $region36: #{tpu_custom_call.1} parent=11 // pred_fallthru
          _
      $region12: #{tpu_custom_call.1} parent=5 // pred_fallthru
        _
      %p227 = scmp.lt.s32.totalorder %s16, 2
      // Predicated region
      $region37: #{tpu_custom_call.1} parent=5 // pred_check
        %p228 = pneg %p227
      $region38: #{tpu_custom_call.1} parent=5 // pred_check_branch
        %230 = sbr.rel (%p228) target = $region40
      $region39: #{tpu_custom_call.1} parent=5 // pred_region
        // Predicated region
        $region41: #{tpu_custom_call.1} parent=39 // pred_check
          %p231 = pneg %p36
        $region42: #{tpu_custom_call.1} parent=39 // pred_check_branch
          %233 = sbr.rel (%p231) target = $region44
        $region43: #{tpu_custom_call.1} parent=39 // pred_region
          %s234 = smul.u32 32, %s16
          %p235 = scmp.lt.s32.totalorder %s234, 63
          %s236 = scalar_select %p235, %s234, 63
          %s237 = smul.addr %s236, 8
          %s238 = scalar_lea.vmem %s0, %s237
          %s239 = smul.u32 32, %s16
        $region44: #{tpu_custom_call.1} parent=39 // pred_fallthru
          _
      $region40: #{tpu_custom_call.1} parent=5 // pred_fallthru
        _
      %p240 = scmp.le.s32.totalorder 1, %s16
      %p241 = scmp.lt.s32.totalorder %s16, 3
      %p242 = pnand %p240, %p241
      %p243 = pneg %p242
      // Predicated region
      $region45: #{tpu_custom_call.1} parent=5 // pred_check
        _
      $region46: #{tpu_custom_call.1} parent=5 // pred_check_branch
        %245 = sbr.rel (%p242) target = $region48
      $region47: #{tpu_custom_call.1} parent=5 // pred_region
        %s246 = ssub.s32 %s16, 1
        %s247 = smul.u32 32, %s21
        %p248 = scmp.lt.s32.totalorder %s247, 63
        %s249 = scalar_select %p248, %s247, 63
        %s250 = smul.addr %s249, 8
        %s251 = scalar_lea.vmem %s0, %s250
        %p252 = pneg %p42
        %p253 = pneg %p39
        %p254 = pneg %p63
        %p255 = pneg %p60
        %p256 = pneg %p84
        %p257 = pneg %p81
        %p258 = pneg %p105
        %p259 = pneg %p102
        %p260 = pneg %p126
        %p261 = pneg %p123
        %p262 = pneg %p147
        %p263 = pneg %p144
        %p264 = pneg %p168
        %p265 = pneg %p165
        %p266 = pneg %p194
        %p267 = pneg %p191
        %s268 = sand.u32 %s181, 1
        %s269 = scalar_lea.sflag [#allocation3], %s268
        %s270 = sand.u32 %s181, 1
        %s271 = smul.addr %s270, 256
        %s272 = scalar_lea.vmem [#allocation2], %s271
        %s273 = smul.u32 32, %s21
        %p274 = scmp.lt.s32.totalorder %s273, 63
        %s275 = scalar_select %p274, %s273, 63
        %s276 = smul.addr %s275, 8
        %s277 = scalar_lea.vmem %s0, %s276
        %s278 = smul.u32 32, %s21
        %s279 = smul.u32 32, %s21
        %v281 = vld [vmem:[%s277] sm:$0xff]
        %v282 = vld [vmem:[%s277 + $0x8] sm:$0xff]
        %v283 = vld [vmem:[%s277 + $0x10] sm:$0xff]
        %v284 = vld [vmem:[%s277 + $0x18] sm:$0xff]
        %v285 = vld [vmem:[%s277 + $0x20] sm:$0xff]
        %v286 = vld [vmem:[%s277 + $0x28] sm:$0xff]
        %v287 = vld [vmem:[%s277 + $0x30] sm:$0xff]
        %v288 = vld [vmem:[%s277 + $0x38] sm:$0xff]
        %v289 = vld [vmem:[%s277 + $0x40] sm:$0xff]
        %v290 = vld [vmem:[%s277 + $0x48] sm:$0xff]
        %v291 = vld [vmem:[%s277 + $0x50] sm:$0xff]
        %v292 = vld [vmem:[%s277 + $0x58] sm:$0xff]
        %v293 = vld [vmem:[%s277 + $0x60] sm:$0xff]
        %v294 = vld [vmem:[%s277 + $0x68] sm:$0xff]
        %v295 = vld [vmem:[%s277 + $0x70] sm:$0xff]
        %v296 = vld [vmem:[%s277 + $0x78] sm:$0xff]
        %v297 = vld [vmem:[%s277 + $0x80] sm:$0xff]
        %v298 = vld [vmem:[%s277 + $0x88] sm:$0xff]
        %v299 = vld [vmem:[%s277 + $0x90] sm:$0xff]
        %v300 = vld [vmem:[%s277 + $0x98] sm:$0xff]
        %v301 = vld [vmem:[%s277 + $0xa0] sm:$0xff]
        %v302 = vld [vmem:[%s277 + $0xa8] sm:$0xff]
        %v303 = vld [vmem:[%s277 + $0xb0] sm:$0xff]
        %v304 = vld [vmem:[%s277 + $0xb8] sm:$0xff]
        %v305 = vld [vmem:[%s277 + $0xc0] sm:$0xff]
        %v306 = vld [vmem:[%s277 + $0xc8] sm:$0xff]
        %v307 = vld [vmem:[%s277 + $0xd0] sm:$0xff]
        %v308 = vld [vmem:[%s277 + $0xd8] sm:$0xff]
        %v309 = vld [vmem:[%s277 + $0xe0] sm:$0xff]
        %v310 = vld [vmem:[%s277 + $0xe8] sm:$0xff]
        %v311 = vld [vmem:[%s277 + $0xf0] sm:$0xff]
        %v312 = vld [vmem:[%s277 + $0xf8] sm:$0xff]
        %v313 = vpack.c.bf16 %v282, %v281
        %v314 = vpack.c.bf16 %v284, %v283
        %v315 = vpack.c.bf16 %v286, %v285
        %v316 = vpack.c.bf16 %v288, %v287
        %v317 = vpack.c.bf16 %v290, %v289
        %v318 = vpack.c.bf16 %v292, %v291
        %v319 = vpack.c.bf16 %v294, %v293
        %v320 = vpack.c.bf16 %v296, %v295
        %v321 = vpack.c.bf16 %v298, %v297
        %v322 = vpack.c.bf16 %v300, %v299
        %v323 = vpack.c.bf16 %v302, %v301
        %v324 = vpack.c.bf16 %v304, %v303
        %v325 = vpack.c.bf16 %v306, %v305
        %v326 = vpack.c.bf16 %v308, %v307
        %v327 = vpack.c.bf16 %v310, %v309
        %v328 = vpack.c.bf16 %v312, %v311
        %v329 = vld [vmem:[%s1] sm:$0xff]
        %v330 = vld [vmem:[%s1 + $0x8] sm:$0xff]
        %v331 = vld [vmem:[%s2] sm:$0x3]
        %v333 = vlaneseq
        %v334 = vshrl.u32 %v333, 7
        %v335 = vsub.s32 0, %v334
        %v336 = vrot.slane %v331, %v335
        %v337 = vlaneseq
        %v338 = vshrl.u32 %v337, 7
        %v339 = vsub.s32 1, %v338
        %v340 = vrot.slane %v331, %v339
        %v345 = vunpack.c.l.b16 %v329
        %v346 = vunpack.c.h.b16 %v329
        %v347 = vunpack.c.l.b16 %v330
        %v348 = vunpack.c.h.b16 %v330
        %v349 = vpack.c.b16 %v347, %v345
        %v350 = vpack.c.b16 %v348, %v346
        %vm353 = vcmask 130048
        %v355 = vsel %vm353, %v313, 0
        %v358 = vsel %vm353, %v314, 0
        %v361 = vsel %vm353, %v315, 0
        %v364 = vsel %vm353, %v316, 0
        %v367 = vsel %vm353, %v317, 0
        %v370 = vsel %vm353, %v318, 0
        %v373 = vsel %vm353, %v319, 0
        %v376 = vsel %vm353, %v320, 0
        %v379 = vsel %vm353, %v321, 0
        %v382 = vsel %vm353, %v322, 0
        %v385 = vsel %vm353, %v323, 0
        %v388 = vsel %vm353, %v324, 0
        %v391 = vsel %vm353, %v325, 0
        %v394 = vsel %vm353, %v326, 0
        %v397 = vsel %vm353, %v327, 0
        %v400 = vsel %vm353, %v328, 0
        %402 = vmatprep.subr.bf16.mxu0 %v350
        %403 = vmatpush1.bf16.msra.mxu0 %v349
        %404 = vmatprep.subr.bf16.mxu0 0
        %405 = vmatpush1.bf16.msra.mxu0 0
        %406 = vmatprep.subr.bf16.mxu0 0
        %407 = vmatpush1.bf16.msra.mxu0 0
        %408 = vmatprep.subr.bf16.mxu0 0
        %409 = vmatpush1.bf16.msra.mxu0 0
        %410 = vmatprep.subr.bf16.mxu0 0
        %411 = vmatpush1.bf16.msra.mxu0 0
        %412 = vmatprep.subr.bf16.mxu0 0
        %413 = vmatpush1.bf16.msra.mxu0 0
        %414 = vmatprep.subr.bf16.mxu0 0
        %415 = vmatpush1.bf16.msra.mxu0 0
        %416 = vmatprep.subr.bf16.mxu0 0
        %417 = vmatpush1.bf16.msra.mxu0 0
        %418 = vmatprep.subr.bf16.mxu0 0
        %419 = vmatpush1.bf16.msra.mxu0 0
        %420 = vmatprep.subr.bf16.mxu0 0
        %421 = vmatpush1.bf16.msra.mxu0 0
        %422 = vmatprep.subr.bf16.mxu0 0
        %423 = vmatpush1.bf16.msra.mxu0 0
        %424 = vmatprep.subr.bf16.mxu0 0
        %425 = vmatpush1.bf16.msra.mxu0 0
        %426 = vmatprep.subr.bf16.mxu0 0
        %427 = vmatpush1.bf16.msra.mxu0 0
        %428 = vmatprep.subr.bf16.mxu0 0
        %429 = vmatpush1.bf16.msra.mxu0 0
        %430 = vmatprep.subr.bf16.mxu0 0
        %431 = vmatpush1.bf16.msra.mxu0 0
        %432 = vmatprep.subr.bf16.mxu0 0
        %433 = vmatpush1.bf16.msra.mxu0 0
        %434 = vmatprep.mubr.bf16.mxu0 0
        %435 = vmatmul.mubr.bf16.gmra.mrb[0].mxu0 %v355
        %v436 = vpop.f32.mrb[0].mxu0
        %v437 = vadd.f32 %v336, %v436
        %v438 = vpop.f32.mrb[0].mxu0
        %v439 = vadd.f32 %v340, %v438
        %v440 = vpop.f32.mrb[0].mxu0
        %v441 = vadd.f32 %v336, %v440
        %v442 = vpop.f32.mrb[0].mxu0
        %v443 = vadd.f32 %v340, %v442
        %444 = vmatprep.mubr.bf16.mxu0 0
        %445 = vmatmul.mubr.bf16.gmra.mrb[0].mxu0 %v358
        %v446 = vpop.f32.mrb[0].mxu0
        %v447 = vadd.f32 %v336, %v446
        %v448 = vpop.f32.mrb[0].mxu0
        %v449 = vadd.f32 %v340, %v448
        %v450 = vpop.f32.mrb[0].mxu0
        %v451 = vadd.f32 %v336, %v450
        %v452 = vpop.f32.mrb[0].mxu0
        %v453 = vadd.f32 %v340, %v452
        %454 = vmatprep.mubr.bf16.mxu0 0
        %455 = vmatmul.mubr.bf16.gmra.mrb[0].mxu0 %v361
        %v456 = vpop.f32.mrb[0].mxu0
        %v457 = vadd.f32 %v336, %v456
        %v458 = vpop.f32.mrb[0].mxu0
        %v459 = vadd.f32 %v340, %v458
        %v460 = vpop.f32.mrb[0].mxu0
        %v461 = vadd.f32 %v336, %v460
        %v462 = vpop.f32.mrb[0].mxu0
        %v463 = vadd.f32 %v340, %v462
        %464 = vmatprep.mubr.bf16.mxu0 0
        %465 = vmatmul.mubr.bf16.gmra.mrb[0].mxu0 %v364
        %v466 = vpop.f32.mrb[0].mxu0
        %v467 = vadd.f32 %v336, %v466
        %v468 = vpop.f32.mrb[0].mxu0
        %v469 = vadd.f32 %v340, %v468
        %v470 = vpop.f32.mrb[0].mxu0
        %v471 = vadd.f32 %v336, %v470
        %v472 = vpop.f32.mrb[0].mxu0
        %v473 = vadd.f32 %v340, %v472
        %474 = vmatprep.mubr.bf16.mxu0 0
        %475 = vmatmul.mubr.bf16.gmra.mrb[0].mxu0 %v367
        %v476 = vpop.f32.mrb[0].mxu0
        %v477 = vadd.f32 %v336, %v476
        %v478 = vpop.f32.mrb[0].mxu0
        %v479 = vadd.f32 %v340, %v478
        %v480 = vpop.f32.mrb[0].mxu0
        %v481 = vadd.f32 %v336, %v480
        %v482 = vpop.f32.mrb[0].mxu0
        %v483 = vadd.f32 %v340, %v482
        %484 = vmatprep.mubr.bf16.mxu0 0
        %485 = vmatmul.mubr.bf16.gmra.mrb[0].mxu0 %v370
        %v486 = vpop.f32.mrb[0].mxu0
        %v487 = vadd.f32 %v336, %v486
        %v488 = vpop.f32.mrb[0].mxu0
        %v489 = vadd.f32 %v340, %v488
        %v490 = vpop.f32.mrb[0].mxu0
        %v491 = vadd.f32 %v336, %v490
        %v492 = vpop.f32.mrb[0].mxu0
        %v493 = vadd.f32 %v340, %v492
        %494 = vmatprep.mubr.bf16.mxu0 0
        %495 = vmatmul.mubr.bf16.gmra.mrb[0].mxu0 %v373
        %v496 = vpop.f32.mrb[0].mxu0
        %v497 = vadd.f32 %v336, %v496
        %v498 = vpop.f32.mrb[0].mxu0
        %v499 = vadd.f32 %v340, %v498
        %v500 = vpop.f32.mrb[0].mxu0
        %v501 = vadd.f32 %v336, %v500
        %v502 = vpop.f32.mrb[0].mxu0
        %v503 = vadd.f32 %v340, %v502
        %504 = vmatprep.mubr.bf16.mxu0 0
        %505 = vmatmul.mubr.bf16.gmra.mrb[0].mxu0 %v376
        %v506 = vpop.f32.mrb[0].mxu0
        %v507 = vadd.f32 %v336, %v506
        %v508 = vpop.f32.mrb[0].mxu0
        %v509 = vadd.f32 %v340, %v508
        %v510 = vpop.f32.mrb[0].mxu0
        %v511 = vadd.f32 %v336, %v510
        %v512 = vpop.f32.mrb[0].mxu0
        %v513 = vadd.f32 %v340, %v512
        %514 = vmatprep.mubr.bf16.mxu0 0
        %515 = vmatmul.mubr.bf16.gmra.mrb[0].mxu0 %v379
        %v516 = vpop.f32.mrb[0].mxu0
        %v517 = vadd.f32 %v336, %v516
        %v518 = vpop.f32.mrb[0].mxu0
        %v519 = vadd.f32 %v340, %v518
        %v520 = vpop.f32.mrb[0].mxu0
        %v521 = vadd.f32 %v336, %v520
        %v522 = vpop.f32.mrb[0].mxu0
        %v523 = vadd.f32 %v340, %v522
        %524 = vmatprep.mubr.bf16.mxu0 0
        %525 = vmatmul.mubr.bf16.gmra.mrb[0].mxu0 %v382
        %v526 = vpop.f32.mrb[0].mxu0
        %v527 = vadd.f32 %v336, %v526
        %v528 = vpop.f32.mrb[0].mxu0
        %v529 = vadd.f32 %v340, %v528
        %v530 = vpop.f32.mrb[0].mxu0
        %v531 = vadd.f32 %v336, %v530
        %v532 = vpop.f32.mrb[0].mxu0
        %v533 = vadd.f32 %v340, %v532
        %534 = vmatprep.mubr.bf16.mxu0 0
        %535 = vmatmul.mubr.bf16.gmra.mrb[0].mxu0 %v385
        %v536 = vpop.f32.mrb[0].mxu0
        %v537 = vadd.f32 %v336, %v536
        %v538 = vpop.f32.mrb[0].mxu0
        %v539 = vadd.f32 %v340, %v538
        %v540 = vpop.f32.mrb[0].mxu0
        %v541 = vadd.f32 %v336, %v540
        %v542 = vpop.f32.mrb[0].mxu0
        %v543 = vadd.f32 %v340, %v542
        %544 = vmatprep.mubr.bf16.mxu0 0
        %545 = vmatmul.mubr.bf16.gmra.mrb[0].mxu0 %v388
        %v546 = vpop.f32.mrb[0].mxu0
        %v547 = vadd.f32 %v336, %v546
        %v548 = vpop.f32.mrb[0].mxu0
        %v549 = vadd.f32 %v340, %v548
        %v550 = vpop.f32.mrb[0].mxu0
        %v551 = vadd.f32 %v336, %v550
        %v552 = vpop.f32.mrb[0].mxu0
        %v553 = vadd.f32 %v340, %v552
        %554 = vmatprep.mubr.bf16.mxu0 0
        %555 = vmatmul.mubr.bf16.gmra.mrb[0].mxu0 %v391
        %v556 = vpop.f32.mrb[0].mxu0
        %v557 = vadd.f32 %v336, %v556
        %v558 = vpop.f32.mrb[0].mxu0
        %v559 = vadd.f32 %v340, %v558
        %v560 = vpop.f32.mrb[0].mxu0
        %v561 = vadd.f32 %v336, %v560
        %v562 = vpop.f32.mrb[0].mxu0
        %v563 = vadd.f32 %v340, %v562
        %564 = vmatprep.mubr.bf16.mxu0 0
        %565 = vmatmul.mubr.bf16.gmra.mrb[0].mxu0 %v394
        %v566 = vpop.f32.mrb[0].mxu0
        %v567 = vadd.f32 %v336, %v566
        %v568 = vpop.f32.mrb[0].mxu0
        %v569 = vadd.f32 %v340, %v568
        %v570 = vpop.f32.mrb[0].mxu0
        %v571 = vadd.f32 %v336, %v570
        %v572 = vpop.f32.mrb[0].mxu0
        %v573 = vadd.f32 %v340, %v572
        %574 = vmatprep.mubr.bf16.mxu0 0
        %575 = vmatmul.mubr.bf16.gmra.mrb[0].mxu0 %v397
        %v576 = vpop.f32.mrb[0].mxu0
        %v577 = vadd.f32 %v336, %v576
        %v578 = vpop.f32.mrb[0].mxu0
        %v579 = vadd.f32 %v340, %v578
        %v580 = vpop.f32.mrb[0].mxu0
        %v581 = vadd.f32 %v336, %v580
        %v582 = vpop.f32.mrb[0].mxu0
        %v583 = vadd.f32 %v340, %v582
        %584 = vmatprep.mubr.bf16.mxu0 0
        %585 = vmatmul.mubr.bf16.gmra.mrb[0].mxu0 %v400
        %v586 = vpop.f32.mrb[0].mxu0
        %v587 = vadd.f32 %v336, %v586
        %v588 = vpop.f32.mrb[0].mxu0
        %v589 = vadd.f32 %v340, %v588
        %v590 = vpop.f32.mrb[0].mxu0
        %v591 = vadd.f32 %v336, %v590
        %v592 = vpop.f32.mrb[0].mxu0
        %v593 = vadd.f32 %v340, %v592
        %594 = vdwg.mxu0
        %v595 = vmax.f32 %v437, 0.0
        %v596 = vmax.f32 %v439, 0.0
        %v597 = vmax.f32 %v441, 0.0
        %v598 = vmax.f32 %v443, 0.0
        %v599 = vmax.f32 %v447, 0.0
        %v600 = vmax.f32 %v449, 0.0
        %v601 = vmax.f32 %v451, 0.0
        %v602 = vmax.f32 %v453, 0.0
        %v603 = vmax.f32 %v457, 0.0
        %v604 = vmax.f32 %v459, 0.0
        %v605 = vmax.f32 %v461, 0.0
        %v606 = vmax.f32 %v463, 0.0
        %v607 = vmax.f32 %v467, 0.0
        %v608 = vmax.f32 %v469, 0.0
        %v609 = vmax.f32 %v471, 0.0
        %v610 = vmax.f32 %v473, 0.0
        %v611 = vmax.f32 %v477, 0.0
        %v612 = vmax.f32 %v479, 0.0
        %v613 = vmax.f32 %v481, 0.0
        %v614 = vmax.f32 %v483, 0.0
        %v615 = vmax.f32 %v487, 0.0
        %v616 = vmax.f32 %v489, 0.0
        %v617 = vmax.f32 %v491, 0.0
        %v618 = vmax.f32 %v493, 0.0
        %v619 = vmax.f32 %v497, 0.0
        %v620 = vmax.f32 %v499, 0.0
        %v621 = vmax.f32 %v501, 0.0
        %v622 = vmax.f32 %v503, 0.0
        %v623 = vmax.f32 %v507, 0.0
        %v624 = vmax.f32 %v509, 0.0
        %v625 = vmax.f32 %v511, 0.0
        %v626 = vmax.f32 %v513, 0.0
        %v627 = vmax.f32 %v517, 0.0
        %v628 = vmax.f32 %v519, 0.0
        %v629 = vmax.f32 %v521, 0.0
        %v630 = vmax.f32 %v523, 0.0
        %v631 = vmax.f32 %v527, 0.0
        %v632 = vmax.f32 %v529, 0.0
        %v633 = vmax.f32 %v531, 0.0
        %v634 = vmax.f32 %v533, 0.0
        %v635 = vmax.f32 %v537, 0.0
        %v636 = vmax.f32 %v539, 0.0
        %v637 = vmax.f32 %v541, 0.0
        %v638 = vmax.f32 %v543, 0.0
        %v639 = vmax.f32 %v547, 0.0
        %v640 = vmax.f32 %v549, 0.0
        %v641 = vmax.f32 %v551, 0.0
        %v642 = vmax.f32 %v553, 0.0
        %v643 = vmax.f32 %v557, 0.0
        %v644 = vmax.f32 %v559, 0.0
        %v645 = vmax.f32 %v561, 0.0
        %v646 = vmax.f32 %v563, 0.0
        %v647 = vmax.f32 %v567, 0.0
        %v648 = vmax.f32 %v569, 0.0
        %v649 = vmax.f32 %v571, 0.0
        %v650 = vmax.f32 %v573, 0.0
        %v651 = vmax.f32 %v577, 0.0
        %v652 = vmax.f32 %v579, 0.0
        %v653 = vmax.f32 %v581, 0.0
        %v654 = vmax.f32 %v583, 0.0
        %v655 = vmax.f32 %v587, 0.0
        %v656 = vmax.f32 %v589, 0.0
        %v657 = vmax.f32 %v591, 0.0
        %v658 = vmax.f32 %v593, 0.0
        %v659 = vpack.c.bf16 %v597, %v595
        %v660 = vpack.c.bf16 %v598, %v596
        %v661 = vpack.c.bf16 %v601, %v599
        %v662 = vpack.c.bf16 %v602, %v600
        %v663 = vpack.c.bf16 %v605, %v603
        %v664 = vpack.c.bf16 %v606, %v604
        %v665 = vpack.c.bf16 %v609, %v607
        %v666 = vpack.c.bf16 %v610, %v608
        %v667 = vpack.c.bf16 %v613, %v611
        %v668 = vpack.c.bf16 %v614, %v612
        %v669 = vpack.c.bf16 %v617, %v615
        %v670 = vpack.c.bf16 %v618, %v616
        %v671 = vpack.c.bf16 %v621, %v619
        %v672 = vpack.c.bf16 %v622, %v620
        %v673 = vpack.c.bf16 %v625, %v623
        %v674 = vpack.c.bf16 %v626, %v624
        %v675 = vpack.c.bf16 %v629, %v627
        %v676 = vpack.c.bf16 %v630, %v628
        %v677 = vpack.c.bf16 %v633, %v631
        %v678 = vpack.c.bf16 %v634, %v632
        %v679 = vpack.c.bf16 %v637, %v635
        %v680 = vpack.c.bf16 %v638, %v636
        %v681 = vpack.c.bf16 %v641, %v639
        %v682 = vpack.c.bf16 %v642, %v640
        %v683 = vpack.c.bf16 %v645, %v643
        %v684 = vpack.c.bf16 %v646, %v644
        %v685 = vpack.c.bf16 %v649, %v647
        %v686 = vpack.c.bf16 %v650, %v648
        %v687 = vpack.c.bf16 %v653, %v651
        %v688 = vpack.c.bf16 %v654, %v652
        %v689 = vpack.c.bf16 %v657, %v655
        %v690 = vpack.c.bf16 %v658, %v656
        %v691 = vld [vmem:[%s3] sm:$0xf]
        %v692 = vld [vmem:[%s3 + $0x4] sm:$0xf]
        %v693 = vld [vmem:[%s3 + $0x8] sm:$0xf]
        %v694 = vld [vmem:[%s3 + $0xc] sm:$0xf]
        %v695 = vld [vmem:[%s3 + $0x10] sm:$0xf]
        %v696 = vld [vmem:[%s3 + $0x14] sm:$0xf]
        %v697 = vld [vmem:[%s3 + $0x18] sm:$0xf]
        %v698 = vld [vmem:[%s3 + $0x1c] sm:$0xf]
        %v699 = vld [vmem:[%s3 + $0x20] sm:$0xf]
        %v700 = vld [vmem:[%s3 + $0x24] sm:$0xf]
        %v701 = vld [vmem:[%s3 + $0x28] sm:$0xf]
        %v702 = vld [vmem:[%s3 + $0x2c] sm:$0xf]
        %v703 = vld [vmem:[%s3 + $0x30] sm:$0xf]
        %v704 = vld [vmem:[%s3 + $0x34] sm:$0xf]
        %v705 = vld [vmem:[%s3 + $0x38] sm:$0xf]
        %v706 = vld [vmem:[%s3 + $0x3c] sm:$0xf]
        %v707 = vld [vmem:[%s3 + $0x40] sm:$0xf]
        %v708 = vld [vmem:[%s3 + $0x44] sm:$0xf]
        %v709 = vld [vmem:[%s3 + $0x48] sm:$0xf]
        %v710 = vld [vmem:[%s3 + $0x4c] sm:$0xf]
        %v711 = vld [vmem:[%s3 + $0x50] sm:$0xf]
        %v712 = vld [vmem:[%s3 + $0x54] sm:$0xf]
        %v713 = vld [vmem:[%s3 + $0x58] sm:$0xf]
        %v714 = vld [vmem:[%s3 + $0x5c] sm:$0xf]
        %v715 = vld [vmem:[%s3 + $0x60] sm:$0xf]
        %v716 = vld [vmem:[%s3 + $0x64] sm:$0xf]
        %v717 = vld [vmem:[%s3 + $0x68] sm:$0xf]
        %v718 = vld [vmem:[%s3 + $0x6c] sm:$0xf]
        %v719 = vld [vmem:[%s3 + $0x70] sm:$0xf]
        %v720 = vld [vmem:[%s3 + $0x74] sm:$0xf]
        %v721 = vld [vmem:[%s3 + $0x78] sm:$0xf]
        %v722 = vld [vmem:[%s3 + $0x7c] sm:$0xf]
        %v723 = vld [vmem:[%s4] sm:$0x1]
        %v725 = vlaneseq
        %v726 = vshrl.u32 %v725, 7
        %v727 = vsub.s32 0, %v726
        %v728 = vrot.slane %v723, %v727
        %v762 = vunpack.c.l.b16 %v691
        %v763 = vunpack.c.l.b16 %v692
        %v764 = vunpack.c.l.b16 %v693
        %v765 = vunpack.c.l.b16 %v694
        %v766 = vunpack.c.l.b16 %v695
        %v767 = vunpack.c.l.b16 %v696
        %v768 = vunpack.c.l.b16 %v697
        %v769 = vunpack.c.l.b16 %v698
        %v770 = vunpack.c.l.b16 %v699
        %v771 = vunpack.c.l.b16 %v700
        %v772 = vunpack.c.l.b16 %v701
        %v773 = vunpack.c.l.b16 %v702
        %v774 = vunpack.c.l.b16 %v703
        %v775 = vunpack.c.l.b16 %v704
        %v776 = vunpack.c.l.b16 %v705
        %v777 = vunpack.c.l.b16 %v706
        %v778 = vunpack.c.l.b16 %v707
        %v779 = vunpack.c.l.b16 %v708
        %v780 = vunpack.c.l.b16 %v709
        %v781 = vunpack.c.l.b16 %v710
        %v782 = vunpack.c.l.b16 %v711
        %v783 = vunpack.c.l.b16 %v712
        %v784 = vunpack.c.l.b16 %v713
        %v785 = vunpack.c.l.b16 %v714
        %v786 = vunpack.c.l.b16 %v715
        %v787 = vunpack.c.l.b16 %v716
        %v788 = vunpack.c.l.b16 %v717
        %v789 = vunpack.c.l.b16 %v718
        %v790 = vunpack.c.l.b16 %v719
        %v791 = vunpack.c.l.b16 %v720
        %v792 = vunpack.c.l.b16 %v721
        %v793 = vunpack.c.l.b16 %v722
        %v794 = vpack.c.b16 %v763, %v762
        %v795 = vpack.c.b16 %v765, %v764
        %v796 = vpack.c.b16 %v767, %v766
        %v797 = vpack.c.b16 %v769, %v768
        %v798 = vpack.c.b16 %v771, %v770
        %v799 = vpack.c.b16 %v773, %v772
        %v800 = vpack.c.b16 %v775, %v774
        %v801 = vpack.c.b16 %v777, %v776
        %v802 = vpack.c.b16 %v779, %v778
        %v803 = vpack.c.b16 %v781, %v780
        %v804 = vpack.c.b16 %v783, %v782
        %v805 = vpack.c.b16 %v785, %v784
        %v806 = vpack.c.b16 %v787, %v786
        %v807 = vpack.c.b16 %v789, %v788
        %v808 = vpack.c.b16 %v791, %v790
        %v809 = vpack.c.b16 %v793, %v792
        %826 = vmatprep.subr.bf16.mxu0 0
        %827 = vmatpush1.bf16.msra.mxu0 %v794
        %828 = vmatprep.subr.bf16.mxu0 0
        %829 = vmatpush1.bf16.msra.mxu0 %v795
        %830 = vmatprep.subr.bf16.mxu0 0
        %831 = vmatpush1.bf16.msra.mxu0 %v796
        %832 = vmatprep.subr.bf16.mxu0 0
        %833 = vmatpush1.bf16.msra.mxu0 %v797
        %834 = vmatprep.subr.bf16.mxu0 0
        %835 = vmatpush1.bf16.msra.mxu0 %v798
        %836 = vmatprep.subr.bf16.mxu0 0
        %837 = vmatpush1.bf16.msra.mxu0 %v799
        %838 = vmatprep.subr.bf16.mxu0 0
        %839 = vmatpush1.bf16.msra.mxu0 %v800
        %840 = vmatprep.subr.bf16.mxu0 0
        %841 = vmatpush1.bf16.msra.mxu0 %v801
        %842 = vmatprep.subr.bf16.mxu0 0
        %843 = vmatpush1.bf16.msra.mxu0 %v802
        %844 = vmatprep.subr.bf16.mxu0 0
        %845 = vmatpush1.bf16.msra.mxu0 %v803
        %846 = vmatprep.subr.bf16.mxu0 0
        %847 = vmatpush1.bf16.msra.mxu0 %v804
        %848 = vmatprep.subr.bf16.mxu0 0
        %849 = vmatpush1.bf16.msra.mxu0 %v805
        %850 = vmatprep.subr.bf16.mxu0 0
        %851 = vmatpush1.bf16.msra.mxu0 %v806
        %852 = vmatprep.subr.bf16.mxu0 0
        %853 = vmatpush1.bf16.msra.mxu0 %v807
        %854 = vmatprep.subr.bf16.mxu0 0
        %855 = vmatpush1.bf16.msra.mxu0 %v808
        %856 = vmatprep.subr.bf16.mxu0 0
        %857 = vmatpush1.bf16.msra.mxu0 %v809
        %858 = vmatprep.mubr.bf16.mxu0 %v660
        %859 = vmatmul.mubr.bf16.gmra.mrb[0].mxu0 %v659
        %v860 = vpop.f32.mrb[0].mxu0
        %v861 = vadd.f32 %v728, %v860
        %v862 = vpop.f32.mrb[0].mxu0
        %v863 = vpop.f32.mrb[0].mxu0
        %v864 = vadd.f32 %v728, %v863
        %v865 = vpop.f32.mrb[0].mxu0
        %866 = vmatprep.mubr.bf16.mxu0 %v662
        %867 = vmatmul.mubr.bf16.gmra.mrb[0].mxu0 %v661
        %v868 = vpop.f32.mrb[0].mxu0
        %v869 = vadd.f32 %v728, %v868
        %v870 = vpop.f32.mrb[0].mxu0
        %v871 = vpop.f32.mrb[0].mxu0
        %v872 = vadd.f32 %v728, %v871
        %v873 = vpop.f32.mrb[0].mxu0
        %874 = vmatprep.mubr.bf16.mxu0 %v664
        %875 = vmatmul.mubr.bf16.gmra.mrb[0].mxu0 %v663
        %v876 = vpop.f32.mrb[0].mxu0
        %v877 = vadd.f32 %v728, %v876
        %v878 = vpop.f32.mrb[0].mxu0
        %v879 = vpop.f32.mrb[0].mxu0
        %v880 = vadd.f32 %v728, %v879
        %v881 = vpop.f32.mrb[0].mxu0
        %882 = vmatprep.mubr.bf16.mxu0 %v666
        %883 = vmatmul.mubr.bf16.gmra.mrb[0].mxu0 %v665
        %v884 = vpop.f32.mrb[0].mxu0
        %v885 = vadd.f32 %v728, %v884
        %v886 = vpop.f32.mrb[0].mxu0
        %v887 = vpop.f32.mrb[0].mxu0
        %v888 = vadd.f32 %v728, %v887
        %v889 = vpop.f32.mrb[0].mxu0
        %890 = vmatprep.mubr.bf16.mxu0 %v668
        %891 = vmatmul.mubr.bf16.gmra.mrb[0].mxu0 %v667
        %v892 = vpop.f32.mrb[0].mxu0
        %v893 = vadd.f32 %v728, %v892
        %v894 = vpop.f32.mrb[0].mxu0
        %v895 = vpop.f32.mrb[0].mxu0
        %v896 = vadd.f32 %v728, %v895
        %v897 = vpop.f32.mrb[0].mxu0
        %898 = vmatprep.mubr.bf16.mxu0 %v670
        %899 = vmatmul.mubr.bf16.gmra.mrb[0].mxu0 %v669
        %v900 = vpop.f32.mrb[0].mxu0
        %v901 = vadd.f32 %v728, %v900
        %v902 = vpop.f32.mrb[0].mxu0
        %v903 = vpop.f32.mrb[0].mxu0
        %v904 = vadd.f32 %v728, %v903
        %v905 = vpop.f32.mrb[0].mxu0
        %906 = vmatprep.mubr.bf16.mxu0 %v672
        %907 = vmatmul.mubr.bf16.gmra.mrb[0].mxu0 %v671
        %v908 = vpop.f32.mrb[0].mxu0
        %v909 = vadd.f32 %v728, %v908
        %v910 = vpop.f32.mrb[0].mxu0
        %v911 = vpop.f32.mrb[0].mxu0
        %v912 = vadd.f32 %v728, %v911
        %v913 = vpop.f32.mrb[0].mxu0
        %914 = vmatprep.mubr.bf16.mxu0 %v674
        %915 = vmatmul.mubr.bf16.gmra.mrb[0].mxu0 %v673
        %v916 = vpop.f32.mrb[0].mxu0
        %v917 = vadd.f32 %v728, %v916
        %v918 = vpop.f32.mrb[0].mxu0
        %v919 = vpop.f32.mrb[0].mxu0
        %v920 = vadd.f32 %v728, %v919
        %v921 = vpop.f32.mrb[0].mxu0
        %922 = vmatprep.mubr.bf16.mxu0 %v676
        %923 = vmatmul.mubr.bf16.gmra.mrb[0].mxu0 %v675
        %v924 = vpop.f32.mrb[0].mxu0
        %v925 = vadd.f32 %v728, %v924
        %v926 = vpop.f32.mrb[0].mxu0
        %v927 = vpop.f32.mrb[0].mxu0
        %v928 = vadd.f32 %v728, %v927
        %v929 = vpop.f32.mrb[0].mxu0
        %930 = vmatprep.mubr.bf16.mxu0 %v678
        %931 = vmatmul.mubr.bf16.gmra.mrb[0].mxu0 %v677
        %v932 = vpop.f32.mrb[0].mxu0
        %v933 = vadd.f32 %v728, %v932
        %v934 = vpop.f32.mrb[0].mxu0
        %v935 = vpop.f32.mrb[0].mxu0
        %v936 = vadd.f32 %v728, %v935
        %v937 = vpop.f32.mrb[0].mxu0
        %938 = vmatprep.mubr.bf16.mxu0 %v680
        %939 = vmatmul.mubr.bf16.gmra.mrb[0].mxu0 %v679
        %v940 = vpop.f32.mrb[0].mxu0
        %v941 = vadd.f32 %v728, %v940
        %v942 = vpop.f32.mrb[0].mxu0
        %v943 = vpop.f32.mrb[0].mxu0
        %v944 = vadd.f32 %v728, %v943
        %v945 = vpop.f32.mrb[0].mxu0
        %946 = vmatprep.mubr.bf16.mxu0 %v682
        %947 = vmatmul.mubr.bf16.gmra.mrb[0].mxu0 %v681
        %v948 = vpop.f32.mrb[0].mxu0
        %v949 = vadd.f32 %v728, %v948
        %v950 = vpop.f32.mrb[0].mxu0
        %v951 = vpop.f32.mrb[0].mxu0
        %v952 = vadd.f32 %v728, %v951
        %v953 = vpop.f32.mrb[0].mxu0
        %954 = vmatprep.mubr.bf16.mxu0 %v684
        %955 = vmatmul.mubr.bf16.gmra.mrb[0].mxu0 %v683
        %v956 = vpop.f32.mrb[0].mxu0
        %v957 = vadd.f32 %v728, %v956
        %v958 = vpop.f32.mrb[0].mxu0
        %v959 = vpop.f32.mrb[0].mxu0
        %v960 = vadd.f32 %v728, %v959
        %v961 = vpop.f32.mrb[0].mxu0
        %962 = vmatprep.mubr.bf16.mxu0 %v686
        %963 = vmatmul.mubr.bf16.gmra.mrb[0].mxu0 %v685
        %v964 = vpop.f32.mrb[0].mxu0
        %v965 = vadd.f32 %v728, %v964
        %v966 = vpop.f32.mrb[0].mxu0
        %v967 = vpop.f32.mrb[0].mxu0
        %v968 = vadd.f32 %v728, %v967
        %v969 = vpop.f32.mrb[0].mxu0
        %970 = vmatprep.mubr.bf16.mxu0 %v688
        %971 = vmatmul.mubr.bf16.gmra.mrb[0].mxu0 %v687
        %v972 = vpop.f32.mrb[0].mxu0
        %v973 = vadd.f32 %v728, %v972
        %v974 = vpop.f32.mrb[0].mxu0
        %v975 = vpop.f32.mrb[0].mxu0
        %v976 = vadd.f32 %v728, %v975
        %v977 = vpop.f32.mrb[0].mxu0
        %978 = vmatprep.mubr.bf16.mxu0 %v690
        %979 = vmatmul.mubr.bf16.gmra.mrb[0].mxu0 %v689
        %v980 = vpop.f32.mrb[0].mxu0
        %v981 = vadd.f32 %v728, %v980
        %v982 = vpop.f32.mrb[0].mxu0
        %v983 = vpop.f32.mrb[0].mxu0
        %v984 = vadd.f32 %v728, %v983
        %v985 = vpop.f32.mrb[0].mxu0
        %986 = vdwg.mxu0
        %v987 = vmax.f32 %v861, 0.0
        %v988 = vmax.f32 %v864, 0.0
        %v989 = vmax.f32 %v869, 0.0
        %v990 = vmax.f32 %v872, 0.0
        %v991 = vmax.f32 %v877, 0.0
        %v992 = vmax.f32 %v880, 0.0
        %v993 = vmax.f32 %v885, 0.0
        %v994 = vmax.f32 %v888, 0.0
        %v995 = vmax.f32 %v893, 0.0
        %v996 = vmax.f32 %v896, 0.0
        %v997 = vmax.f32 %v901, 0.0
        %v998 = vmax.f32 %v904, 0.0
        %v999 = vmax.f32 %v909, 0.0
        %v1000 = vmax.f32 %v912, 0.0
        %v1001 = vmax.f32 %v917, 0.0
        %v1002 = vmax.f32 %v920, 0.0
        %v1003 = vmax.f32 %v925, 0.0
        %v1004 = vmax.f32 %v928, 0.0
        %v1005 = vmax.f32 %v933, 0.0
        %v1006 = vmax.f32 %v936, 0.0
        %v1007 = vmax.f32 %v941, 0.0
        %v1008 = vmax.f32 %v944, 0.0
        %v1009 = vmax.f32 %v949, 0.0
        %v1010 = vmax.f32 %v952, 0.0
        %v1011 = vmax.f32 %v957, 0.0
        %v1012 = vmax.f32 %v960, 0.0
        %v1013 = vmax.f32 %v965, 0.0
        %v1014 = vmax.f32 %v968, 0.0
        %v1015 = vmax.f32 %v973, 0.0
        %v1016 = vmax.f32 %v976, 0.0
        %v1017 = vmax.f32 %v981, 0.0
        %v1018 = vmax.f32 %v984, 0.0
        %v1019 = vpack.c.bf16 %v988, %v987
        %v1020 = vpack.c.bf16 %v990, %v989
        %v1021 = vpack.c.bf16 %v992, %v991
        %v1022 = vpack.c.bf16 %v994, %v993
        %v1023 = vpack.c.bf16 %v996, %v995
        %v1024 = vpack.c.bf16 %v998, %v997
        %v1025 = vpack.c.bf16 %v1000, %v999
        %v1026 = vpack.c.bf16 %v1002, %v1001
        %v1027 = vpack.c.bf16 %v1004, %v1003
        %v1028 = vpack.c.bf16 %v1006, %v1005
        %v1029 = vpack.c.bf16 %v1008, %v1007
        %v1030 = vpack.c.bf16 %v1010, %v1009
        %v1031 = vpack.c.bf16 %v1012, %v1011
        %v1032 = vpack.c.bf16 %v1014, %v1013
        %v1033 = vpack.c.bf16 %v1016, %v1015
        %v1034 = vpack.c.bf16 %v1018, %v1017
        %v1035 = vld [vmem:[%s5] sm:$0xf]
        %v1036 = vld [vmem:[%s5 + $0x4] sm:$0xf]
        %v1037 = vld [vmem:[%s5 + $0x8] sm:$0xf]
        %v1038 = vld [vmem:[%s5 + $0xc] sm:$0xf]
        %v1039 = vld [vmem:[%s5 + $0x10] sm:$0xf]
        %v1040 = vld [vmem:[%s5 + $0x14] sm:$0xf]
        %v1041 = vld [vmem:[%s5 + $0x18] sm:$0xf]
        %v1042 = vld [vmem:[%s5 + $0x1c] sm:$0xf]
        %v1043 = vld [vmem:[%s5 + $0x20] sm:$0xf]
        %v1044 = vld [vmem:[%s5 + $0x24] sm:$0xf]
        %v1045 = vld [vmem:[%s5 + $0x28] sm:$0xf]
        %v1046 = vld [vmem:[%s5 + $0x2c] sm:$0xf]
        %v1047 = vld [vmem:[%s5 + $0x30] sm:$0xf]
        %v1048 = vld [vmem:[%s5 + $0x34] sm:$0xf]
        %v1049 = vld [vmem:[%s5 + $0x38] sm:$0xf]
        %v1050 = vld [vmem:[%s5 + $0x3c] sm:$0xf]
        %v1051 = vld [vmem:[%s6] sm:$0x1]
        %v1053 = vlaneseq
        %v1054 = vshrl.u32 %v1053, 7
        %v1055 = vsub.s32 0, %v1054
        %v1056 = vrot.slane %v1051, %v1055
        %v1074 = vunpack.c.l.b16 %v1035
        %v1075 = vunpack.c.l.b16 %v1036
        %v1076 = vunpack.c.l.b16 %v1037
        %v1077 = vunpack.c.l.b16 %v1038
        %v1078 = vunpack.c.l.b16 %v1039
        %v1079 = vunpack.c.l.b16 %v1040
        %v1080 = vunpack.c.l.b16 %v1041
        %v1081 = vunpack.c.l.b16 %v1042
        %v1082 = vunpack.c.l.b16 %v1043
        %v1083 = vunpack.c.l.b16 %v1044
        %v1084 = vunpack.c.l.b16 %v1045
        %v1085 = vunpack.c.l.b16 %v1046
        %v1086 = vunpack.c.l.b16 %v1047
        %v1087 = vunpack.c.l.b16 %v1048
        %v1088 = vunpack.c.l.b16 %v1049
        %v1089 = vunpack.c.l.b16 %v1050
        %v1090 = vpack.c.b16 %v1075, %v1074
        %v1091 = vpack.c.b16 %v1077, %v1076
        %v1092 = vpack.c.b16 %v1079, %v1078
        %v1093 = vpack.c.b16 %v1081, %v1080
        %v1094 = vpack.c.b16 %v1083, %v1082
        %v1095 = vpack.c.b16 %v1085, %v1084
        %v1096 = vpack.c.b16 %v1087, %v1086
        %v1097 = vpack.c.b16 %v1089, %v1088
        %1106 = vmatprep.subr.bf16.mxu0 0
        %1107 = vmatpush1.bf16.msra.mxu0 %v1090
        %1108 = vmatprep.subr.bf16.mxu0 0
        %1109 = vmatpush1.bf16.msra.mxu0 %v1091
        %1110 = vmatprep.subr.bf16.mxu0 0
        %1111 = vmatpush1.bf16.msra.mxu0 %v1092
        %1112 = vmatprep.subr.bf16.mxu0 0
        %1113 = vmatpush1.bf16.msra.mxu0 %v1093
        %1114 = vmatprep.subr.bf16.mxu0 0
        %1115 = vmatpush1.bf16.msra.mxu0 %v1094
        %1116 = vmatprep.subr.bf16.mxu0 0
        %1117 = vmatpush1.bf16.msra.mxu0 %v1095
        %1118 = vmatprep.subr.bf16.mxu0 0
        %1119 = vmatpush1.bf16.msra.mxu0 %v1096
        %1120 = vmatprep.subr.bf16.mxu0 0
        %1121 = vmatpush1.bf16.msra.mxu0 %v1097
        %1122 = vmatprep.subr.bf16.mxu0 0
        %1123 = vmatpush1.bf16.msra.mxu0 0
        %1124 = vmatprep.subr.bf16.mxu0 0
        %1125 = vmatpush1.bf16.msra.mxu0 0
        %1126 = vmatprep.subr.bf16.mxu0 0
        %1127 = vmatpush1.bf16.msra.mxu0 0
        %1128 = vmatprep.subr.bf16.mxu0 0
        %1129 = vmatpush1.bf16.msra.mxu0 0
        %1130 = vmatprep.subr.bf16.mxu0 0
        %1131 = vmatpush1.bf16.msra.mxu0 0
        %1132 = vmatprep.subr.bf16.mxu0 0
        %1133 = vmatpush1.bf16.msra.mxu0 0
        %1134 = vmatprep.subr.bf16.mxu0 0
        %1135 = vmatpush1.bf16.msra.mxu0 0
        %1136 = vmatprep.subr.bf16.mxu0 0
        %1137 = vmatpush1.bf16.msra.mxu0 0
        %1138 = vmatprep.mubr.bf16.mxu0 0
        %1139 = vmatmul.mubr.bf16.gmra.mrb[0].mxu0 %v1019
        %v1140 = vpop.f32.mrb[0].mxu0
        %v1141 = vadd.f32 %v1056, %v1140
        %v1142 = vpop.f32.mrb[0].mxu0
        %v1143 = vpop.f32.mrb[0].mxu0
        %v1144 = vadd.f32 %v1056, %v1143
        %v1145 = vpop.f32.mrb[0].mxu0
        %1146 = vmatprep.mubr.bf16.mxu0 0
        %1147 = vmatmul.mubr.bf16.gmra.mrb[0].mxu0 %v1020
        %v1148 = vpop.f32.mrb[0].mxu0
        %v1149 = vadd.f32 %v1056, %v1148
        %v1150 = vpop.f32.mrb[0].mxu0
        %v1151 = vpop.f32.mrb[0].mxu0
        %v1152 = vadd.f32 %v1056, %v1151
        %v1153 = vpop.f32.mrb[0].mxu0
        %1154 = vmatprep.mubr.bf16.mxu0 0
        %1155 = vmatmul.mubr.bf16.gmra.mrb[0].mxu0 %v1021
        %v1156 = vpop.f32.mrb[0].mxu0
        %v1157 = vadd.f32 %v1056, %v1156
        %v1158 = vpop.f32.mrb[0].mxu0
        %v1159 = vpop.f32.mrb[0].mxu0
        %v1160 = vadd.f32 %v1056, %v1159
        %v1161 = vpop.f32.mrb[0].mxu0
        %1162 = vmatprep.mubr.bf16.mxu0 0
        %1163 = vmatmul.mubr.bf16.gmra.mrb[0].mxu0 %v1022
        %v1164 = vpop.f32.mrb[0].mxu0
        %v1165 = vadd.f32 %v1056, %v1164
        %v1166 = vpop.f32.mrb[0].mxu0
        %v1167 = vpop.f32.mrb[0].mxu0
        %v1168 = vadd.f32 %v1056, %v1167
        %v1169 = vpop.f32.mrb[0].mxu0
        %1170 = vmatprep.mubr.bf16.mxu0 0
        %1171 = vmatmul.mubr.bf16.gmra.mrb[0].mxu0 %v1023
        %v1172 = vpop.f32.mrb[0].mxu0
        %v1173 = vadd.f32 %v1056, %v1172
        %v1174 = vpop.f32.mrb[0].mxu0
        %v1175 = vpop.f32.mrb[0].mxu0
        %v1176 = vadd.f32 %v1056, %v1175
        %v1177 = vpop.f32.mrb[0].mxu0
        %1178 = vmatprep.mubr.bf16.mxu0 0
        %1179 = vmatmul.mubr.bf16.gmra.mrb[0].mxu0 %v1024
        %v1180 = vpop.f32.mrb[0].mxu0
        %v1181 = vadd.f32 %v1056, %v1180
        %v1182 = vpop.f32.mrb[0].mxu0
        %v1183 = vpop.f32.mrb[0].mxu0
        %v1184 = vadd.f32 %v1056, %v1183
        %v1185 = vpop.f32.mrb[0].mxu0
        %1186 = vmatprep.mubr.bf16.mxu0 0
        %1187 = vmatmul.mubr.bf16.gmra.mrb[0].mxu0 %v1025
        %v1188 = vpop.f32.mrb[0].mxu0
        %v1189 = vadd.f32 %v1056, %v1188
        %v1190 = vpop.f32.mrb[0].mxu0
        %v1191 = vpop.f32.mrb[0].mxu0
        %v1192 = vadd.f32 %v1056, %v1191
        %v1193 = vpop.f32.mrb[0].mxu0
        %1194 = vmatprep.mubr.bf16.mxu0 0
        %1195 = vmatmul.mubr.bf16.gmra.mrb[0].mxu0 %v1026
        %v1196 = vpop.f32.mrb[0].mxu0
        %v1197 = vadd.f32 %v1056, %v1196
        %v1198 = vpop.f32.mrb[0].mxu0
        %v1199 = vpop.f32.mrb[0].mxu0
        %v1200 = vadd.f32 %v1056, %v1199
        %v1201 = vpop.f32.mrb[0].mxu0
        %1202 = vmatprep.mubr.bf16.mxu0 0
        %1203 = vmatmul.mubr.bf16.gmra.mrb[0].mxu0 %v1027
        %v1204 = vpop.f32.mrb[0].mxu0
        %v1205 = vadd.f32 %v1056, %v1204
        %v1206 = vpop.f32.mrb[0].mxu0
        %v1207 = vpop.f32.mrb[0].mxu0
        %v1208 = vadd.f32 %v1056, %v1207
        %v1209 = vpop.f32.mrb[0].mxu0
        %1210 = vmatprep.mubr.bf16.mxu0 0
        %1211 = vmatmul.mubr.bf16.gmra.mrb[0].mxu0 %v1028
        %v1212 = vpop.f32.mrb[0].mxu0
        %v1213 = vadd.f32 %v1056, %v1212
        %v1214 = vpop.f32.mrb[0].mxu0
        %v1215 = vpop.f32.mrb[0].mxu0
        %v1216 = vadd.f32 %v1056, %v1215
        %v1217 = vpop.f32.mrb[0].mxu0
        %1218 = vmatprep.mubr.bf16.mxu0 0
        %1219 = vmatmul.mubr.bf16.gmra.mrb[0].mxu0 %v1029
        %v1220 = vpop.f32.mrb[0].mxu0
        %v1221 = vadd.f32 %v1056, %v1220
        %v1222 = vpop.f32.mrb[0].mxu0
        %v1223 = vpop.f32.mrb[0].mxu0
        %v1224 = vadd.f32 %v1056, %v1223
        %v1225 = vpop.f32.mrb[0].mxu0
        %1226 = vmatprep.mubr.bf16.mxu0 0
        %1227 = vmatmul.mubr.bf16.gmra.mrb[0].mxu0 %v1030
        %v1228 = vpop.f32.mrb[0].mxu0
        %v1229 = vadd.f32 %v1056, %v1228
        %v1230 = vpop.f32.mrb[0].mxu0
        %v1231 = vpop.f32.mrb[0].mxu0
        %v1232 = vadd.f32 %v1056, %v1231
        %v1233 = vpop.f32.mrb[0].mxu0
        %1234 = vmatprep.mubr.bf16.mxu0 0
        %1235 = vmatmul.mubr.bf16.gmra.mrb[0].mxu0 %v1031
        %v1236 = vpop.f32.mrb[0].mxu0
        %v1237 = vadd.f32 %v1056, %v1236
        %v1238 = vpop.f32.mrb[0].mxu0
        %v1239 = vpop.f32.mrb[0].mxu0
        %v1240 = vadd.f32 %v1056, %v1239
        %v1241 = vpop.f32.mrb[0].mxu0
        %1242 = vmatprep.mubr.bf16.mxu0 0
        %1243 = vmatmul.mubr.bf16.gmra.mrb[0].mxu0 %v1032
        %v1244 = vpop.f32.mrb[0].mxu0
        %v1245 = vadd.f32 %v1056, %v1244
        %v1246 = vpop.f32.mrb[0].mxu0
        %v1247 = vpop.f32.mrb[0].mxu0
        %v1248 = vadd.f32 %v1056, %v1247
        %v1249 = vpop.f32.mrb[0].mxu0
        %1250 = vmatprep.mubr.bf16.mxu0 0
        %1251 = vmatmul.mubr.bf16.gmra.mrb[0].mxu0 %v1033
        %v1252 = vpop.f32.mrb[0].mxu0
        %v1253 = vadd.f32 %v1056, %v1252
        %v1254 = vpop.f32.mrb[0].mxu0
        %v1255 = vpop.f32.mrb[0].mxu0
        %v1256 = vadd.f32 %v1056, %v1255
        %v1257 = vpop.f32.mrb[0].mxu0
        %1258 = vmatprep.mubr.bf16.mxu0 0
        %1259 = vmatmul.mubr.bf16.gmra.mrb[0].mxu0 %v1034
        %v1260 = vpop.f32.mrb[0].mxu0
        %v1261 = vadd.f32 %v1056, %v1260
        %v1262 = vpop.f32.mrb[0].mxu0
        %v1263 = vpop.f32.mrb[0].mxu0
        %v1264 = vadd.f32 %v1056, %v1263
        %v1265 = vpop.f32.mrb[0].mxu0
        %1266 = vdwg.mxu0
        %v1267 = vtanh.pop %v1141
        %v1268 = vtanh.pop %v1144
        %v1269 = vtanh.pop %v1149
        %v1270 = vtanh.pop %v1152
        %v1271 = vtanh.pop %v1157
        %v1272 = vtanh.pop %v1160
        %v1273 = vtanh.pop %v1165
        %v1274 = vtanh.pop %v1168
        %v1275 = vtanh.pop %v1173
        %v1276 = vtanh.pop %v1176
        %v1277 = vtanh.pop %v1181
        %v1278 = vtanh.pop %v1184
        %v1279 = vtanh.pop %v1189
        %v1280 = vtanh.pop %v1192
        %v1281 = vtanh.pop %v1197
        %v1282 = vtanh.pop %v1200
        %v1283 = vtanh.pop %v1205
        %v1284 = vtanh.pop %v1208
        %v1285 = vtanh.pop %v1213
        %v1286 = vtanh.pop %v1216
        %v1287 = vtanh.pop %v1221
        %v1288 = vtanh.pop %v1224
        %v1289 = vtanh.pop %v1229
        %v1290 = vtanh.pop %v1232
        %v1291 = vtanh.pop %v1237
        %v1292 = vtanh.pop %v1240
        %v1293 = vtanh.pop %v1245
        %v1294 = vtanh.pop %v1248
        %v1295 = vtanh.pop %v1253
        %v1296 = vtanh.pop %v1256
        %v1297 = vtanh.pop %v1261
        %v1298 = vtanh.pop %v1264
        %1299 = vst [vmem:[%s272] sm:$0xff] %v1267
        %1300 = vst [vmem:[%s272 + $0x8] sm:$0xff] %v1268
        %1301 = vst [vmem:[%s272 + $0x10] sm:$0xff] %v1269
        %1302 = vst [vmem:[%s272 + $0x18] sm:$0xff] %v1270
        %1303 = vst [vmem:[%s272 + $0x20] sm:$0xff] %v1271
        %1304 = vst [vmem:[%s272 + $0x28] sm:$0xff] %v1272
        %1305 = vst [vmem:[%s272 + $0x30] sm:$0xff] %v1273
        %1306 = vst [vmem:[%s272 + $0x38] sm:$0xff] %v1274
        %1307 = vst [vmem:[%s272 + $0x40] sm:$0xff] %v1275
        %1308 = vst [vmem:[%s272 + $0x48] sm:$0xff] %v1276
        %1309 = vst [vmem:[%s272 + $0x50] sm:$0xff] %v1277
        %1310 = vst [vmem:[%s272 + $0x58] sm:$0xff] %v1278
        %1311 = vst [vmem:[%s272 + $0x60] sm:$0xff] %v1279
        %1312 = vst [vmem:[%s272 + $0x68] sm:$0xff] %v1280
        %1313 = vst [vmem:[%s272 + $0x70] sm:$0xff] %v1281
        %1314 = vst [vmem:[%s272 + $0x78] sm:$0xff] %v1282
        %1315 = vst [vmem:[%s272 + $0x80] sm:$0xff] %v1283
        %1316 = vst [vmem:[%s272 + $0x88] sm:$0xff] %v1284
        %1317 = vst [vmem:[%s272 + $0x90] sm:$0xff] %v1285
        %1318 = vst [vmem:[%s272 + $0x98] sm:$0xff] %v1286
        %1319 = vst [vmem:[%s272 + $0xa0] sm:$0xff] %v1287
        %1320 = vst [vmem:[%s272 + $0xa8] sm:$0xff] %v1288
        %1321 = vst [vmem:[%s272 + $0xb0] sm:$0xff] %v1289
        %1322 = vst [vmem:[%s272 + $0xb8] sm:$0xff] %v1290
        %1323 = vst [vmem:[%s272 + $0xc0] sm:$0xff] %v1291
        %1324 = vst [vmem:[%s272 + $0xc8] sm:$0xff] %v1292
        %1325 = vst [vmem:[%s272 + $0xd0] sm:$0xff] %v1293
        %1326 = vst [vmem:[%s272 + $0xd8] sm:$0xff] %v1294
        %1327 = vst [vmem:[%s272 + $0xe0] sm:$0xff] %v1295
        %1328 = vst [vmem:[%s272 + $0xe8] sm:$0xff] %v1296
        %1329 = vst [vmem:[%s272 + $0xf0] sm:$0xff] %v1297
        %1330 = vst [vmem:[%s272 + $0xf8] sm:$0xff] %v1298
        %s1331 = sand.u32 %s181, 1
        %s1332 = scalar_lea.sflag [#allocation3], %s1331
        %s1333 = sand.u32 %s181, 1
        %s1334 = smul.addr %s1333, 256
        %s1335 = scalar_lea.vmem [#allocation2], %s1334
        // Predicated region
        $region49: #{tpu_custom_call.1} parent=47 // pred_check
          %p1336 = pneg %p191
        $region50: #{tpu_custom_call.1} parent=47 // pred_check_branch
          %1338 = sbr.rel (%p1336) target = $region52
        $region51: #{tpu_custom_call.1} parent=47 // pred_region
          %s1339 = smul.u32 32, %s21
          %s1341 = ssub.s32 4096, 4096
          %1342 = vsyncadd %s1332, %s1341
          %s1343 = smul.addr %s1339, 128
          %s1344 = scalar_lea.hbm %s7, %s1343
          %s1345 = sshll.u32 %s1335, 4
          %s1346 = int_to_ptr.vmem [resolvable:$true] %s1345
          %1351 = dma.vmem_to_hbm [thread:$0]  %s1346, 4096, %s1344, %s1332, 128, 128, 8
        $region52: #{tpu_custom_call.1} parent=47 // pred_fallthru
          _
      $region48: #{tpu_custom_call.1} parent=5 // pred_fallthru
        _
      %p1352 = scmp.le.s32.totalorder 2, %s16
      // Predicated region
      $region53: #{tpu_custom_call.1} parent=5 // pred_check
        %p1353 = pneg %p1352
      $region54: #{tpu_custom_call.1} parent=5 // pred_check_branch
        %1355 = sbr.rel (%p1353) target = $region56
      $region55: #{tpu_custom_call.1} parent=5 // pred_region
        %s1356 = ssub.s32 %s16, 2
        // Predicated region
        $region57: #{tpu_custom_call.1} parent=55 // pred_check
          %p1357 = pneg %p197
        $region58: #{tpu_custom_call.1} parent=55 // pred_check_branch
          %1359 = sbr.rel (%p1357) target = $region60
        $region59: #{tpu_custom_call.1} parent=55 // pred_region
          %s1360 = sand.u32 %s182, 1
          %s1361 = scalar_lea.sflag [#allocation3], %s1360
          %s1362 = sand.u32 %s182, 1
          %s1363 = smul.addr %s1362, 256
          %s1364 = scalar_lea.vmem [#allocation2], %s1363
          %1365 = dma.done %s1361, 4096
        $region60: #{tpu_custom_call.1} parent=55 // pred_fallthru
          _
      $region56: #{tpu_custom_call.1} parent=5 // pred_fallthru
        _
    $region6: #{tpu_custom_call.1} parent=1 // loop_footer
      %s20 = sadd.s32 1, %s16
    $region7: #{tpu_custom_call.1} parent=1 // loop_footer_branch
      %15 = sbr.rel target = $region3
    $region8: #{tpu_custom_call.1} parent=1 // loop_exit
      _
    %1366 = vsyncpa [#allocation3], 1
    %s1367 = scalar_lea.sflag [#allocation3], 1
    %1368 = vsyncpa %s1367, 1

</llo_original>
